<compile_context>
chip_gen: v5e
topology: v5e:2x2
jax: 0.10.0
libtpu: 0.0.40
codegen_flags: <defaults>
</compile_context>

<pallas_src>
import functools
import math

import jax
import jax.numpy as jnp
from jax import lax
from jax.experimental import pallas as pl
from jax.experimental.pallas import tpu as pltpu

EPS = 1e-5                               # F.layer_norm default
_VMEM_TILE_BUDGET = 12 * 1024 * 1024     # per-tile working set (double-buffered in/out + f32 temps)
_VMEM_LIMIT = 32 * 1024 * 1024           # explicit scoped-VMEM cap (safe on v5e/v6e/v7x)


def _sublane_mult(dtype):
    # f32 -> 8 sublanes, bf16 -> 16, int8/fp8 -> 32
    return {4: 8, 2: 16, 1: 32}.get(jnp.dtype(dtype).itemsize, 8)


# ---------------------------------------------------------------------------
# Path 1: a whole row (all non-batch dims) fits in a VMEM tile -> fused kernel.
# ---------------------------------------------------------------------------
def _layernorm_row_kernel(x_ref, o_ref, *, n):
    x = x_ref[...].astype(jnp.float32)
    inv_n = 1.0 / n
    s = jnp.sum(x, axis=-1, keepdims=True)
    s2 = jnp.sum(x * x, axis=-1, keepdims=True)
    mean = s * inv_n
    var = jnp.maximum(s2 * inv_n - mean * mean, 0.0)   # guard cancellation
    rstd = lax.rsqrt(var + EPS)
    o_ref[...] = ((x - mean) * rstd).astype(o_ref.dtype)


def _layer_norm_single_pass(x2d, tb):
    b, n = x2d.shape
    itemsize = jnp.dtype(x2d.dtype).itemsize
    cost = pl.CostEstimate(
        flops=int(5 * b * n),
        transcendentals=int(b),
        bytes_accessed=int(2 * b * n * itemsize),
    )
    return pl.pallas_call(
        functools.partial(_layernorm_row_kernel, n=n),
        out_shape=jax.ShapeDtypeStruct((b, n), x2d.dtype),
        grid_spec=pltpu.PrefetchScalarGridSpec(
            num_scalar_prefetch=0,
            grid=(pl.cdiv(b, tb),),
            in_specs=[pl.BlockSpec((tb, n), lambda i: (i, 0))],
            out_specs=pl.BlockSpec((tb, n), lambda i: (i, 0)),
        ),
        compiler_params=pltpu.CompilerParams(
            dimension_semantics=("parallel",),
            vmem_limit_bytes=_VMEM_LIMIT,
        ),
        cost_estimate=cost,
    )(x2d)


# ---------------------------------------------------------------------------
# Path 2: rows too large for one VMEM tile -> stats accumulator + apply sweep.
# ---------------------------------------------------------------------------
def _stats_kernel(x_ref, mean_ref, rstd_ref, sum_sc, sq_sc, *, n, tn):
    j = pl.program_id(1)

    @pl.when(j == 0)
    def _():
        sum_sc[...] = jnp.zeros_like(sum_sc)
        sq_sc[...] = jnp.zeros_like(sq_sc)

    x = x_ref[...].astype(jnp.float32)
    # Mask columns that fall outside the real row length (partial last tile).
    col = lax.broadcasted_iota(jnp.int32, x.shape, 1) + j * tn
    x = jnp.where(col < n, x, 0.0)
    sum_sc[...] += jnp.sum(x, axis=-1, keepdims=True)
    sq_sc[...] += jnp.sum(x * x, axis=-1, keepdims=True)

    @pl.when(j == pl.num_programs(1) - 1)
    def _():
        inv_n = 1.0 / n
        mean = sum_sc[...] * inv_n
        var = jnp.maximum(sq_sc[...] * inv_n - mean * mean, 0.0)
        mean_ref[...] = mean
        rstd_ref[...] = lax.rsqrt(var + EPS)


def _apply_kernel(x_ref, mean_ref, rstd_ref, o_ref):
    x = x_ref[...].astype(jnp.float32)
    o_ref[...] = ((x - mean_ref[...]) * rstd_ref[...]).astype(o_ref.dtype)


def _layer_norm_two_pass(x2d, tb, tn):
    b, n = x2d.shape
    itemsize = jnp.dtype(x2d.dtype).itemsize
    rt = pl.cdiv(b, tb)
    ct = pl.cdiv(n, tn)

    stats_cost = pl.CostEstimate(
        flops=int(3 * b * n),
        transcendentals=int(b),
        bytes_accessed=int(b * n * itemsize + 8 * b),
    )
    mean, rstd = pl.pallas_call(
        functools.partial(_stats_kernel, n=n, tn=tn),
        out_shape=(jax.ShapeDtypeStruct((b, 1), jnp.float32),
                   jax.ShapeDtypeStruct((b, 1), jnp.float32)),
        grid_spec=pltpu.PrefetchScalarGridSpec(
            num_scalar_prefetch=0,
            grid=(rt, ct),
            in_specs=[pl.BlockSpec((tb, tn), lambda i, j: (i, j))],
            out_specs=[pl.BlockSpec((tb, 1), lambda i, j: (i, 0)),
                       pl.BlockSpec((tb, 1), lambda i, j: (i, 0))],
            scratch_shapes=[pltpu.VMEM((tb, 1), jnp.float32),
                            pltpu.VMEM((tb, 1), jnp.float32)],
        ),
        compiler_params=pltpu.CompilerParams(
            dimension_semantics=("parallel", "arbitrary"),
            vmem_limit_bytes=_VMEM_LIMIT,
        ),
        cost_estimate=stats_cost,
    )(x2d)

    apply_cost = pl.CostEstimate(
        flops=int(2 * b * n),
        transcendentals=0,
        bytes_accessed=int(2 * b * n * itemsize + 8 * b),
    )
    out = pl.pallas_call(
        _apply_kernel,
        out_shape=jax.ShapeDtypeStruct((b, n), x2d.dtype),
        grid_spec=pltpu.PrefetchScalarGridSpec(
            num_scalar_prefetch=0,
            grid=(rt, ct),
            in_specs=[pl.BlockSpec((tb, tn), lambda i, j: (i, j)),
                      pl.BlockSpec((tb, 1), lambda i, j: (i, 0)),
                      pl.BlockSpec((tb, 1), lambda i, j: (i, 0))],
            out_specs=pl.BlockSpec((tb, tn), lambda i, j: (i, j)),
        ),
        compiler_params=pltpu.CompilerParams(
            dimension_semantics=("parallel", "parallel"),
            vmem_limit_bytes=_VMEM_LIMIT,
        ),
        cost_estimate=apply_cost,
    )(x2d, mean, rstd)
    return out


# ---------------------------------------------------------------------------
# Wrapper
# ---------------------------------------------------------------------------
def _layer_norm_2d(x2d, *, force_two_pass=False):
    b, n = x2d.shape
    itemsize = jnp.dtype(x2d.dtype).itemsize
    sub = _sublane_mult(x2d.dtype)
    b_pad = ((b + sub - 1) // sub) * sub

    # Per-row working-set estimate for the fused path:
    #   2x double-buffered input + 2x double-buffered output + ~3 f32 temporaries.
    bytes_per_row = 4 * n * itemsize + 3 * n * 4
    rows_in_budget = _VMEM_TILE_BUDGET // max(bytes_per_row, 1)

    if rows_in_budget >= sub and not force_two_pass:
        tb = min((rows_in_budget // sub) * sub, b_pad)
        return _layer_norm_single_pass(x2d, tb)

    # Rows too large for a single VMEM tile: accumulate sum/sum-sq over column tiles.
    tb = sub
    n_pad = ((n + 127) // 128) * 128
    bytes_per_col = tb * (4 * itemsize + 3 * 4)
    cols_in_budget = max(_VMEM_TILE_BUDGET // max(bytes_per_col, 1), 128)
    tn = min((cols_in_budget // 128) * 128, n_pad)
    return _layer_norm_two_pass(x2d, tb, tn)


def layer_norm(x, *, force_two_pass=False):
    """Pallas equivalent of F.layer_norm(x, list(x.size()[1:])) — normalize each
    batch element over every remaining dimension, no learnable affine.

    Note: for tiny activations (a few KiB) a standalone pallas_call is dominated by
    dispatch overhead; at the call site prefer letting XLA fuse it with the adjacent
    conv. The kernel is exercised directly here for verification.
    """
    orig_shape = x.shape
    b = orig_shape[0]
    n = math.prod(orig_shape[1:])
    x2d = x.reshape(b, n)
    out2d = _layer_norm_2d(x2d, force_two_pass=force_two_pass)
    return out2d.reshape(orig_shape)


def _layer_norm_ref(x):
    xf = x.reshape(x.shape[0], -1).astype(jnp.float32)
    mean = jnp.mean(xf, axis=-1, keepdims=True)
    var = jnp.mean((xf - mean) ** 2, axis=-1, keepdims=True)
    return ((xf - mean) / jnp.sqrt(var + EPS)).reshape(x.shape).astype(x.dtype)


if __name__ == "__main__":
    key = jax.random.PRNGKey(0)
    k1, k2 = jax.random.split(key)

    # 1) Fused single-pass path (NCHW decoder activation, small demo shape).
    x1 = jax.random.normal(k1, (2, 4, 16, 16), dtype=jnp.float32)
    out1 = layer_norm(x1)
    jax.block_until_ready(out1)
    assert jnp.allclose(out1, _layer_norm_ref(x1), atol=1e-5, rtol=1e-5)

    # 2) Two-pass accumulator path (the code path used when a row is too large for
    #    VMEM), forced here on a small, non-128-multiple row so the column-mask and
    #    accumulator init/finalize logic is also exercised.
    x2 = jax.random.normal(k2, (4, 3, 10, 10), dtype=jnp.float32)
    out2 = layer_norm(x2, force_two_pass=True)
    jax.block_until_ready(out2)
    assert jnp.allclose(out2, _layer_norm_ref(x2), atol=1e-5, rtol=1e-5)

    print("KERNEL_OK")
</pallas_src>

<mosaic_0001>
module attributes {stable_mosaic.version = 11 : i64} {
  func.func @_layernorm_row_kernel(%arg0: i32, %arg1: memref<8x1024xf32, #tpu.memory_space<vmem>>, %arg2: memref<8x1024xf32, #tpu.memory_space<vmem>>) attributes {dimension_semantics = [#tpu.dimension_semantics<parallel>], iteration_bounds = array<i64: 1>, scalar_prefetch = 0 : i64, scratch_operands = 0 : i64, tpu.core_type = #tpu.core_type<tc>, window_params = [{transform_indices = @transform_0, window_bounds = array<i64: 8, 1024>}, {transform_indices = @transform_1, window_bounds = array<i64: 8, 1024>}]} {
    %c0 = arith.constant 0 : index
    %c0_0 = arith.constant 0 : index
    %0 = vector.load %arg1[%c0, %c0_0] : memref<8x1024xf32, #tpu.memory_space<vmem>>, vector<8x1024xf32>
    %cst = arith.constant dense<0.000000e+00> : vector<8xf32>
    %1 = vector.multi_reduction <add>, %0, %cst [1] : vector<8x1024xf32> to vector<8xf32>
    %2 = vector.shape_cast %1 : vector<8xf32> to vector<8x1xf32>
    %3 = arith.mulf %0, %0 : vector<8x1024xf32>
    %cst_1 = arith.constant dense<0.000000e+00> : vector<8xf32>
    %4 = vector.multi_reduction <add>, %3, %cst_1 [1] : vector<8x1024xf32> to vector<8xf32>
    %5 = vector.shape_cast %4 : vector<8xf32> to vector<8x1xf32>
    %cst_2 = arith.constant 9.765625E-4 : f32
    %6 = vector.broadcast %cst_2 : f32 to vector<8x1xf32>
    %7 = arith.mulf %2, %6 : vector<8x1xf32>
    %cst_3 = arith.constant 9.765625E-4 : f32
    %8 = vector.broadcast %cst_3 : f32 to vector<8x1xf32>
    %9 = arith.mulf %5, %8 : vector<8x1xf32>
    %10 = arith.mulf %7, %7 : vector<8x1xf32>
    %11 = arith.subf %9, %10 : vector<8x1xf32>
    %cst_4 = arith.constant 0.000000e+00 : f32
    %12 = vector.broadcast %cst_4 : f32 to vector<8x1xf32>
    %13 = arith.maximumf %11, %12 : vector<8x1xf32>
    %cst_5 = arith.constant 9.99999974E-6 : f32
    %14 = vector.broadcast %cst_5 : f32 to vector<8x1xf32>
    %15 = arith.addf %13, %14 : vector<8x1xf32>
    %16 = math.rsqrt %15 : vector<8x1xf32>
    %17 = vector.broadcast %7 : vector<8x1xf32> to vector<8x1024xf32>
    %18 = arith.subf %0, %17 : vector<8x1024xf32>
    %19 = vector.broadcast %16 : vector<8x1xf32> to vector<8x1024xf32>
    %20 = arith.mulf %18, %19 : vector<8x1024xf32>
    %c0_6 = arith.constant 0 : index
    %c0_7 = arith.constant 0 : index
    %21 = vector.load %arg2[%c0_6, %c0_7] : memref<8x1024xf32, #tpu.memory_space<vmem>>, vector<8x1024xf32>
    tpu.vector_store %arg2[%c0_6, %c0_7], %20 {strides = array<i32>} : memref<8x1024xf32, #tpu.memory_space<vmem>>, vector<8x1024xf32>,
    return
  }
  func.func @transform_0(%arg0: i32) -> (i32, i32) {
    %c0_i32 = arith.constant 0 : i32
    %c0_i32_0 = arith.constant 0 : i32
    return %arg0, %c0_i32 : i32, i32
  }
  func.func @transform_1(%arg0: i32) -> (i32, i32) {
    %c0_i32 = arith.constant 0 : i32
    %c0_i32_0 = arith.constant 0 : i32
    return %arg0, %c0_i32 : i32, i32
  }
}

</mosaic_0001>

<llo_original>
// kernel: tpu_custom_call.1
$region0: #{tpu_custom_call.1}
  #allocation0 [shape = 'u32[]', space=smem, size = 0x4, offset = 0x4, fixed_abs, tag = 'smem constant byte address 0x4 - core index']
  #allocation1 [shape = 'u32[72,128]{1,0:T(1,128)}', space=vmem, size = 0x9000, scoped, tag = 'internal scratch']
  %s0 = inlined_call_operand.hbm [shape: f32[2,1024], index: 0, kind: input, shape index: {}]
  %s1 = inlined_call_operand.hbm [shape: f32[2,1024], index: 1, kind: output, shape index: {}]
  %s2 = sld [smem:[#allocation0]]
  $region18: #{tpu_custom_call.1} parent=0
    _
  %s4 = ssub.s32 1, %s2
  %s5 = scalar_select 0, %s4, %s2
  $region1: #{tpu_custom_call.1} parent=0
    #allocation2 [shape = 'u8[32768]{0}', space=vmem, size = 0x8000, scoped, tag = 'input window, operand 0, single buffered']
    #allocation3 [shape = 's32[1]{0}', space=sflag, size = 0x4, scoped, tag = 'scoped memory for tpu_custom_call.1']
    #allocation4 [shape = 's32[1]{0}', space=sflag, size = 0x4, scoped, tag = 'scoped memory for tpu_custom_call.1']
    #allocation5 [shape = 'u8[32768]{0}', space=vmem, size = 0x8000, scoped, tag = 'output window, operand 0, single buffered']
    %6 = vsyncpa [#allocation3], 0
    %7 = vsyncpa [#allocation4], 0
    // Predicated region
    $region2: #{tpu_custom_call.1} parent=1 // pred_check
      _
    $region3: #{tpu_custom_call.1} parent=1 // pred_check_branch
      %9 = sbr.rel (0) target = $region5
    $region4: #{tpu_custom_call.1} parent=1 // pred_region
      %11 = vsyncadd [#allocation3], 768
      %s12 = sshll.u32 %s0, 4
      %s13 = int_to_ptr.hbm [resolvable:$true] %s12
      %s14 = sshll.u32 [#allocation2], 4
      %s15 = int_to_ptr.vmem [resolvable:$true] %s14
      %20 = dma.hbm_to_vmem [thread:$0]  %s13, 256, %s15, [#allocation3], 256, 256, 16
    $region5: #{tpu_custom_call.1} parent=1 // pred_fallthru
      _
    // Predicated region
    $region6: #{tpu_custom_call.1} parent=1 // pred_check
      _
    $region7: #{tpu_custom_call.1} parent=1 // pred_check_branch
      %22 = sbr.rel (0) target = $region9
    $region8: #{tpu_custom_call.1} parent=1 // pred_region
      %24 = dma.done [#allocation3], 1024
    $region9: #{tpu_custom_call.1} parent=1 // pred_fallthru
      _
    %v25 = vld [vmem:[#allocation2] sm:$0xff]
    %v26 = vld [vmem:[#allocation2 + $0x8] sm:$0xff]
    %v27 = vld [vmem:[#allocation2 + $0x10] sm:$0xff]
    %v28 = vld [vmem:[#allocation2 + $0x18] sm:$0xff]
    %v29 = vld [vmem:[#allocation2 + $0x20] sm:$0xff]
    %v30 = vld [vmem:[#allocation2 + $0x28] sm:$0xff]
    %v31 = vld [vmem:[#allocation2 + $0x30] sm:$0xff]
    %v32 = vld [vmem:[#allocation2 + $0x38] sm:$0xff]
    %41 = vst [vmem:[#allocation1] ss:$4 sm:$0xff] %v25
    %s42 = scalar_lea.vmem [#allocation1], 1
    %43 = vst [vmem:[%s42] ss:$4 sm:$0xff] %v27
    %s44 = scalar_lea.vmem [#allocation1], 2
    %45 = vst [vmem:[%s44] ss:$4 sm:$0xff] %v29
    %s46 = scalar_lea.vmem [#allocation1], 3
    %47 = vst [vmem:[%s46] ss:$4 sm:$0xff] %v31
    %s48 = scalar_lea.vmem [#allocation1], 32
    %49 = vst [vmem:[%s48] ss:$4 sm:$0xff] %v26
    %s50 = scalar_lea.vmem [#allocation1], 33
    %51 = vst [vmem:[%s50] ss:$4 sm:$0xff] %v28
    %s52 = scalar_lea.vmem [#allocation1], 34
    %53 = vst [vmem:[%s52] ss:$4 sm:$0xff] %v30
    %s54 = scalar_lea.vmem [#allocation1], 35
    %55 = vst [vmem:[%s54] ss:$4 sm:$0xff] %v32
    %v56 = vld.sshfl [vmem:[#allocation1] sm:$0xff pattern:$0x73625140]
    %v57 = vld.sshfl [vmem:[#allocation1 + $0x8] sm:$0xff pattern:$0x73625140]
    %v58 = vld.sshfl [vmem:[#allocation1 + $0x10] sm:$0xff pattern:$0x73625140]
    %v59 = vld.sshfl [vmem:[#allocation1 + $0x18] sm:$0xff pattern:$0x73625140]
    %v60 = vld.sshfl [vmem:[#allocation1 + $0x20] sm:$0xff pattern:$0x73625140]
    %v61 = vld.sshfl [vmem:[#allocation1 + $0x28] sm:$0xff pattern:$0x73625140]
    %v62 = vld.sshfl [vmem:[#allocation1 + $0x30] sm:$0xff pattern:$0x73625140]
    %v63 = vld.sshfl [vmem:[#allocation1 + $0x38] sm:$0xff pattern:$0x73625140]
    %v72 = vadd.f32 %v56, %v57
    %v73 = vadd.f32 %v72, %v58
    %v74 = vadd.f32 %v73, %v59
    %v75 = vadd.f32 %v74, %v60
    %v76 = vadd.f32 %v75, %v61
    %v77 = vadd.f32 %v76, %v62
    %v78 = vadd.f32 %v77, %v63
    %79 = vadd.xlane.f32.xlu0 %v78
    %v80 = vpop.xlane.xlu0 %79
    %v81 = vmul.f32 %v25, %v25
    %v82 = vmul.f32 %v26, %v26
    %v83 = vmul.f32 %v27, %v27
    %v84 = vmul.f32 %v28, %v28
    %v85 = vmul.f32 %v29, %v29
    %v86 = vmul.f32 %v30, %v30
    %v87 = vmul.f32 %v31, %v31
    %v88 = vmul.f32 %v32, %v32
    %97 = vst [vmem:[#allocation1] ss:$4 sm:$0xff] %v81
    %s98 = scalar_lea.vmem [#allocation1], 1
    %99 = vst [vmem:[%s98] ss:$4 sm:$0xff] %v83
    %s100 = scalar_lea.vmem [#allocation1], 2
    %101 = vst [vmem:[%s100] ss:$4 sm:$0xff] %v85
    %s102 = scalar_lea.vmem [#allocation1], 3
    %103 = vst [vmem:[%s102] ss:$4 sm:$0xff] %v87
    %s104 = scalar_lea.vmem [#allocation1], 32
    %105 = vst [vmem:[%s104] ss:$4 sm:$0xff] %v82
    %s106 = scalar_lea.vmem [#allocation1], 33
    %107 = vst [vmem:[%s106] ss:$4 sm:$0xff] %v84
    %s108 = scalar_lea.vmem [#allocation1], 34
    %109 = vst [vmem:[%s108] ss:$4 sm:$0xff] %v86
    %s110 = scalar_lea.vmem [#allocation1], 35
    %111 = vst [vmem:[%s110] ss:$4 sm:$0xff] %v88
    %v112 = vld.sshfl [vmem:[#allocation1] sm:$0xff pattern:$0x73625140]
    %v113 = vld.sshfl [vmem:[#allocation1 + $0x8] sm:$0xff pattern:$0x73625140]
    %v114 = vld.sshfl [vmem:[#allocation1 + $0x10] sm:$0xff pattern:$0x73625140]
    %v115 = vld.sshfl [vmem:[#allocation1 + $0x18] sm:$0xff pattern:$0x73625140]
    %v116 = vld.sshfl [vmem:[#allocation1 + $0x20] sm:$0xff pattern:$0x73625140]
    %v117 = vld.sshfl [vmem:[#allocation1 + $0x28] sm:$0xff pattern:$0x73625140]
    %v118 = vld.sshfl [vmem:[#allocation1 + $0x30] sm:$0xff pattern:$0x73625140]
    %v119 = vld.sshfl [vmem:[#allocation1 + $0x38] sm:$0xff pattern:$0x73625140]
    %v128 = vadd.f32 %v112, %v113
    %v129 = vadd.f32 %v128, %v114
    %v130 = vadd.f32 %v129, %v115
    %v131 = vadd.f32 %v130, %v116
    %v132 = vadd.f32 %v131, %v117
    %v133 = vadd.f32 %v132, %v118
    %v134 = vadd.f32 %v133, %v119
    %135 = vadd.xlane.f32.xlu0 %v134
    %v136 = vpop.xlane.xlu0 %135
    %v137 = vmul.f32 %v80, 0.0009765625
    %v138 = vmul.f32 %v136, 0.0009765625
    %v139 = vmul.f32 %v137, %v137
    %v140 = vsub.f32 %v138, %v139
    %v141 = vmax.f32 %v140, 0.0
    %v142 = vadd.f32 %v141, 1e-05
    %v143 = vrsqrt.pop %v142
    %v144 = vmul.f32 %v143, %v142
    %v145 = vmul.f32 %v144, %v143
    %v146 = vmul.f32 0.5, %v145
    %v147 = vsub.f32 1.5, %v146
    %v148 = vmul.f32 %v143, %v147
    %vm149 = vweird.f32 %v142
    %vm150 = vweird.f32 %v143
    %vm151 = vmor %vm149, %vm150
    %v152 = vsel %vm151, %v143, %v148
    %v155 = vunpack.c.l.s4 269488144
    %v156 = vunpack.c.0.s8 %v155
    %v157 = vperm.slane %v137, %v156
    %v159 = vunpack.c.l.s4 842150450
    %v160 = vunpack.c.0.s8 %v159
    %v161 = vperm.slane %v137, %v160
    %v163 = vunpack.c.l.s4 1414812756
    %v164 = vunpack.c.0.s8 %v163
    %v165 = vperm.slane %v137, %v164
    %v167 = vunpack.c.l.s4 1987475062
    %v168 = vunpack.c.0.s8 %v167
    %v169 = vperm.slane %v137, %v168
    %v174 = vsub.f32 %v25, %v157
    %v175 = vsub.f32 %v26, %v157
    %v176 = vsub.f32 %v27, %v161
    %v177 = vsub.f32 %v28, %v161
    %v178 = vsub.f32 %v29, %v165
    %v179 = vsub.f32 %v30, %v165
    %v180 = vsub.f32 %v31, %v169
    %v181 = vsub.f32 %v32, %v169
    %v184 = vunpack.c.l.s4 269488144
    %v185 = vunpack.c.0.s8 %v184
    %v186 = vperm.slane %v152, %v185
    %v188 = vunpack.c.l.s4 842150450
    %v189 = vunpack.c.0.s8 %v188
    %v190 = vperm.slane %v152, %v189
    %v192 = vunpack.c.l.s4 1414812756
    %v193 = vunpack.c.0.s8 %v192
    %v194 = vperm.slane %v152, %v193
    %v196 = vunpack.c.l.s4 1987475062
    %v197 = vunpack.c.0.s8 %v196
    %v198 = vperm.slane %v152, %v197
    %v203 = vmul.f32 %v174, %v186
    %v204 = vmul.f32 %v175, %v186
    %v205 = vmul.f32 %v176, %v190
    %v206 = vmul.f32 %v177, %v190
    %v207 = vmul.f32 %v178, %v194
    %v208 = vmul.f32 %v179, %v194
    %v209 = vmul.f32 %v180, %v198
    %v210 = vmul.f32 %v181, %v198
    %211 = vst [vmem:[#allocation5] sm:$0xff] %v203
    %212 = vst [vmem:[#allocation5 + $0x8] sm:$0xff] %v204
    %213 = vst [vmem:[#allocation5 + $0x10] sm:$0xff] %v205
    %214 = vst [vmem:[#allocation5 + $0x18] sm:$0xff] %v206
    %215 = vst [vmem:[#allocation5 + $0x20] sm:$0xff] %v207
    %216 = vst [vmem:[#allocation5 + $0x28] sm:$0xff] %v208
    %217 = vst [vmem:[#allocation5 + $0x30] sm:$0xff] %v209
    %218 = vst [vmem:[#allocation5 + $0x38] sm:$0xff] %v210
    // Predicated region
    $region10: #{tpu_custom_call.1} parent=1 // pred_check
      _
    $region11: #{tpu_custom_call.1} parent=1 // pred_check_branch
      %220 = sbr.rel (0) target = $region13
    $region12: #{tpu_custom_call.1} parent=1 // pred_region
      %222 = vsyncadd [#allocation4], 768
      %s223 = sshll.u32 [#allocation5], 4
      %s224 = int_to_ptr.vmem [resolvable:$true] %s223
      %s225 = sshll.u32 %s1, 4
      %s226 = int_to_ptr.hbm [resolvable:$true] %s225
      %231 = dma.vmem_to_hbm [thread:$0]  %s224, 256, %s226, [#allocation4], 256, 256, 16
    $region13: #{tpu_custom_call.1} parent=1 // pred_fallthru
      _
    // Predicated region
    $region14: #{tpu_custom_call.1} parent=1 // pred_check
      _
    $region15: #{tpu_custom_call.1} parent=1 // pred_check_branch
      %233 = sbr.rel (0) target = $region17
    $region16: #{tpu_custom_call.1} parent=1 // pred_region
      %235 = dma.done [#allocation4], 1024
    $region17: #{tpu_custom_call.1} parent=1 // pred_fallthru
      _
    %236 = vsyncpa [#allocation3], 1
    %237 = vsyncpa [#allocation4], 1

</llo_original>
